<compile_context>
chip_gen: v6e
topology: v6e:2x2x1
jax: 0.10.0
libtpu: 0.0.40
codegen_flags: <defaults>
</compile_context>

<pallas_src>
import functools

import jax
import jax.numpy as jnp
from jax import lax
from jax.experimental import pallas as pl
from jax.experimental.pallas import tpu as pltpu


def _visual_embed_kernel(x_ref, pos_ref, gamma_ref, beta_ref, o_ref, acc_ref,
                         *, eps, inv_num_frames):
    # x_ref:     (1, TF, Ts, C)  frame-chunk of one (batch, token-tile)
    # pos_ref:   (Ts, C)         pre-summed row + col + token-type embeddings
    # gamma_ref: (1, C), beta_ref: (1, C)
    # o_ref:     (1, Ts, C)
    # acc_ref:   (Ts, C) f32 VMEM accumulator, persistent over the frame grid axis (last)
    f = pl.program_id(2)

    @pl.when(f == 0)
    def _():
        acc_ref[...] = jnp.zeros_like(acc_ref)

    # Single axis-0 reduction over this block's frames: acc is read/written once per step
    # (no unrolled add chain materializing (Ts, C) temporaries per frame).
    acc_ref[...] += jnp.sum(x_ref[0].astype(jnp.float32), axis=0)

    @pl.when(f == pl.num_programs(2) - 1)
    def _():
        # frame mean + (2D positional + token-type) embedding
        tok = acc_ref[...] * inv_num_frames + pos_ref[...].astype(jnp.float32)
        # LayerNorm over the hidden dim (centered form for numerical stability)
        mean = jnp.mean(tok, axis=-1, keepdims=True)
        centered = tok - mean
        var = jnp.mean(centered * centered, axis=-1, keepdims=True)
        normed = centered * lax.rsqrt(var + eps)
        out = (normed * gamma_ref[...].astype(jnp.float32)
               + beta_ref[...].astype(jnp.float32))
        # TODO(synk): dropout is identity here (eval mode); training-mode dropout not implemented.
        o_ref[0] = out.astype(o_ref.dtype)


def _vmem_physical_bytes():
    """Physical VMEM per TensorCore; conservative fallback if the query is unavailable."""
    try:
        info = pltpu.get_tpu_info()
        cap = getattr(info, "vmem_capacity_bytes", None)
        if cap:
            return int(cap)
    except Exception:
        pass
    return 64 << 20  # v7x per-TC VMEM (smallest across generations) — safe everywhere


def _pick_token_tile(S, B, max_tile=512):
    """Pick a (8,128)-legal spatial tile.

    Prefers the largest multiple-of-8 divisor of S <= max_tile; among near-maximal choices,
    prefers one whose B * n_token_tiles product is even and >= 2 (v7x megacore balance).
    For awkward S it falls back to a multiple-of-8 tile with a masked partial last block
    (per-token math: out-of-bounds rows read garbage but their writes are dropped).
    """
    def n_tiles(t):
        return -(-S // t)

    cands = [t for t in range(8, min(S, max_tile) + 1, 8) if S % t == 0]
    if S <= max_tile:
        cands.append(S)                       # full extent is always layout-legal
    # masked-last-tile candidates (only strictly smaller than S)
    for parts in (2, 4):
        t = ((-(-S // parts) + 7) // 8) * 8
        if 8 <= t < S and t <= max_tile:
            cands.append(t)
    if not cands:
        return min(max_tile, ((S + 7) // 8) * 8)

    best = max(cands)
    good = [t for t in cands
            if 2 * t >= best
            and (B * n_tiles(t)) >= 2
            and (B * n_tiles(t)) % 2 == 0]
    return max(good) if good else best


def _vmem_bytes(frame_tile, token_tile, C, x_itemsize, pos_itemsize, out_itemsize, x_buffers):
    return (x_buffers * frame_tile * token_tile * C * x_itemsize   # x, multi-buffered
            + 2 * token_tile * C * pos_itemsize                    # pos, double-buffered
            + 2 * token_tile * C * out_itemsize                    # out, double-buffered
            + token_tile * C * 4                                   # f32 accumulator scratch
            + 4 * 2 * C * 4)                                       # gamma/beta (tiny)


def _pick_frame_tile(F, token_tile, C, x_itemsize, pos_itemsize, out_itemsize,
                     vmem_budget, x_buffers, max_frame_tile):
    """Largest divisor of F (<= max_frame_tile) whose buffers fit the VMEM budget."""
    best = 1
    for t in range(1, min(F, max_frame_tile) + 1):
        if F % t == 0 and _vmem_bytes(t, token_tile, C, x_itemsize, pos_itemsize,
                                      out_itemsize, x_buffers) <= vmem_budget:
            best = t
    return best


def visual_input_embedding(grid, row_emb, col_emb, tok_emb, ln_gamma, ln_beta,
                           *, eps=1e-12, token_tile=None, frame_tile=None,
                           input_dtype=None, out_dtype=None,
                           max_token_tile=512, max_frame_tile=8,
                           x_buffers=2, vmem_budget_bytes=None):
    """grid: (B, F, H, W, C) channels-last -> (B, H*W, C).

    input_dtype: optionally feed x / pos in a narrower dtype (e.g. jnp.bfloat16) to halve the
    dominant HBM read traffic; the kernel always accumulates and normalizes in f32.
    """
    B, F, H, W, C = grid.shape
    assert row_emb.shape[0] >= H and col_emb.shape[0] >= W
    S = H * W

    if out_dtype is None:
        out_dtype = grid.dtype
    x_dtype = input_dtype if input_dtype is not None else grid.dtype
    pos_dtype = input_dtype if input_dtype is not None else jnp.float32

    phys = _vmem_physical_bytes()
    if vmem_budget_bytes is None:
        # per-generation budget: ~60% of physical, capped at 48 MiB (fits v7x's 64 MiB)
        vmem_budget_bytes = min(48 << 20, int(phys * 0.6))

    if token_tile is None:
        token_tile = _pick_token_tile(S, B, max_token_tile)
    assert token_tile == S or token_tile % 8 == 0, token_tile

    x_itemsize = jnp.dtype(x_dtype).itemsize
    pos_itemsize = jnp.dtype(pos_dtype).itemsize
    out_itemsize = jnp.dtype(out_dtype).itemsize

    if frame_tile is None:
        frame_tile = _pick_frame_tile(F, token_tile, C, x_itemsize, pos_itemsize,
                                      out_itemsize, vmem_budget_bytes, x_buffers,
                                      max_frame_tile)
    # Partial frame blocks would corrupt the mean, so frame_tile must divide F exactly.
    assert F % frame_tile == 0, (F, frame_tile)

    # Hoisted positional + token-type embedding: computed once here (JAX does not CSE
    # broadcast_in_dim across grid steps), a single add per tile inside the kernel.
    pos = (row_emb[:H][:, None, :].astype(jnp.float32)
           + col_emb[:W][None, :, :].astype(jnp.float32)
           + tok_emb[None, None, :].astype(jnp.float32)).reshape(S, C).astype(pos_dtype)

    # Flatten spatial dims in the wrapper so no in-kernel reshape/relayout is needed.
    x = grid.reshape(B, F, S, C).astype(x_dtype)
    gamma2 = ln_gamma.reshape(1, C)
    beta2 = ln_beta.reshape(1, C)

    kernel = functools.partial(_visual_embed_kernel, eps=eps, inv_num_frames=1.0 / F)

    n_s = pl.cdiv(S, token_tile)   # partial last tile OK: per-token math, OOB writes dropped
    n_f = F // frame_tile

    needed = _vmem_bytes(frame_tile, token_tile, C, x_itemsize, pos_itemsize,
                         out_itemsize, x_buffers)
    vmem_limit = max(needed + (8 << 20), 32 << 20)
    vmem_limit = min(int(vmem_limit), phys)

    x_spec_kwargs = {}
    if x_buffers > 2:   # extra x buffer only when explicitly requested and budgeted
        x_spec_kwargs["pipeline_mode"] = pl.Buffered(x_buffers)

    # TODO(synk): C < 128 (as in the small demo config) leaves vector lanes idle on the output
    # store; production hidden sizes (768/1024) are already lane-dense.
    return pl.pallas_call(
        kernel,
        out_shape=jax.ShapeDtypeStruct((B, S, C), out_dtype),
        grid_spec=pltpu.PrefetchScalarGridSpec(
            num_scalar_prefetch=0,
            # token-tile axis outermost so pos is fetched n_s times (not B*n_s);
            # frame (reduction) axis last.
            grid=(n_s, B, n_f),
            in_specs=[
                pl.BlockSpec((1, frame_tile, token_tile, C),
                             lambda s, b, f: (b, f, s, 0), **x_spec_kwargs),
                pl.BlockSpec((token_tile, C), lambda s, b, f: (s, 0)),
                pl.BlockSpec((1, C), lambda s, b, f: (0, 0)),
                pl.BlockSpec((1, C), lambda s, b, f: (0, 0)),
            ],
            out_specs=pl.BlockSpec((1, token_tile, C), lambda s, b, f: (b, s, 0)),
            scratch_shapes=[pltpu.VMEM((token_tile, C), jnp.float32)],
        ),
        compiler_params=pltpu.CompilerParams(
            dimension_semantics=("parallel", "parallel", "arbitrary"),
            vmem_limit_bytes=vmem_limit),
    )(x, pos, gamma2, beta2)


def reference(grid, row_emb, col_emb, tok_emb, gamma, beta, eps=1e-12):
    B, F, H, W, C = grid.shape
    g = grid.astype(jnp.float32).mean(axis=1)
    g = g + row_emb[:H][None, :, None, :] + col_emb[:W][None, None, :, :]
    tok = g.reshape(B, H * W, C) + tok_emb[None, None, :]
    mean = tok.mean(-1, keepdims=True)
    var = ((tok - mean) ** 2).mean(-1, keepdims=True)
    return (tok - mean) / jnp.sqrt(var + eps) * gamma + beta


if __name__ == "__main__":
    # small config: hidden_size=32, max_grid_row/col_position_embeddings=8, 4 frames
    B, F, H, W, C = 2, 4, 8, 8, 32
    max_row, max_col = 8, 8
    key = jax.random.PRNGKey(0)
    k0, k1, k2, k3 = jax.random.split(key, 4)

    grid = jax.random.normal(k0, (B, F, H, W, C), dtype=jnp.float32)
    row_emb = 0.02 * jax.random.normal(k1, (max_row, C), dtype=jnp.float32)
    col_emb = 0.02 * jax.random.normal(k2, (max_col, C), dtype=jnp.float32)
    tok_emb = 0.02 * jax.random.normal(k3, (C,), dtype=jnp.float32)
    ln_gamma = jnp.ones((C,), dtype=jnp.float32)
    ln_beta = jnp.zeros((C,), dtype=jnp.float32)

    ref = reference(grid, row_emb, col_emb, tok_emb, ln_gamma, ln_beta)

    # 1) explicit small tiles: exercises the spatial grid axis + multi-step frame reduction
    out = visual_input_embedding(grid, row_emb, col_emb, tok_emb, ln_gamma, ln_beta,
                                 token_tile=32, frame_tile=2)
    out = jax.block_until_ready(out)
    assert out.shape == (B, H * W, C), out.shape
    assert jnp.allclose(out, ref, atol=1e-4, rtol=1e-4), float(jnp.max(jnp.abs(out - ref)))

    # 2) auto tiles: budget-derived frame_tile / megacore-aware token_tile
    out_auto = jax.block_until_ready(
        visual_input_embedding(grid, row_emb, col_emb, tok_emb, ln_gamma, ln_beta))
    assert jnp.allclose(out_auto, ref, atol=1e-4, rtol=1e-4)

    # 3) bf16 input path (halves dominant HBM read traffic; kernel accumulates in f32)
    out_bf16 = jax.block_until_ready(
        visual_input_embedding(grid, row_emb, col_emb, tok_emb, ln_gamma, ln_beta,
                               input_dtype=jnp.bfloat16))
    assert jnp.allclose(out_bf16, ref, atol=1e-1, rtol=1e-2)

    print("KERNEL_OK")
</pallas_src>

<mosaic_0001>
module attributes {stable_mosaic.version = 11 : i64} {
  func.func @_visual_embed_kernel(%arg0: i32, %arg1: i32, %arg2: i32, %arg3: memref<1x2x32x32xf32, #tpu.memory_space<vmem>>, %arg4: memref<32x32xf32, #tpu.memory_space<vmem>>, %arg5: memref<1x32xf32, #tpu.memory_space<vmem>>, %arg6: memref<1x32xf32, #tpu.memory_space<vmem>>, %arg7: memref<1x32x32xf32, #tpu.memory_space<vmem>>, %arg8: memref<32x32xf32, #tpu.memory_space<vmem>>) attributes {dimension_semantics = [#tpu.dimension_semantics<parallel>, #tpu.dimension_semantics<parallel>, #tpu.dimension_semantics<arbitrary>], iteration_bounds = array<i64: 2, 2, 2>, scalar_prefetch = 0 : i64, scratch_operands = 1 : i64, tpu.core_type = #tpu.core_type<tc>, window_params = [{transform_indices = @transform_0, window_bounds = array<i64: 1, 2, 32, 32>}, {transform_indices = @transform_1, window_bounds = array<i64: 32, 32>}, {pipeline_mode = #tpu.pipeline_mode<synchronous>, transform_indices = @transform_2, window_bounds = array<i64: 1, 32>}, {pipeline_mode = #tpu.pipeline_mode<synchronous>, transform_indices = @transform_3, window_bounds = array<i64: 1, 32>}, {transform_indices = @transform_4, window_bounds = array<i64: 1, 32, 32>}]} {
    %c0_i32 = arith.constant 0 : i32
    %0 = arith.cmpi eq, %arg2, %c0_i32 : i32
    %1 = arith.extui %0 : i1 to i32
    %c0_i32_0 = arith.constant 0 : i32
    %2 = arith.cmpi ne, %1, %c0_i32_0 : i32
    scf.if %2 {
      %cst_9 = arith.constant 0.000000e+00 : f32
      %12 = vector.broadcast %cst_9 : f32 to vector<32x32xf32>
      %c0_10 = arith.constant 0 : index
      %c0_11 = arith.constant 0 : index
      %13 = vector.load %arg8[%c0_10, %c0_11] : memref<32x32xf32, #tpu.memory_space<vmem>>, vector<32x32xf32>
      tpu.vector_store %arg8[%c0_10, %c0_11], %12 {strides = array<i32>} : memref<32x32xf32, #tpu.memory_space<vmem>>, vector<32x32xf32>,
    } else {
    }
    %c0 = arith.constant 0 : index
    %c0_1 = arith.constant 0 : index
    %3 = vector.load %arg8[%c0, %c0_1] : memref<32x32xf32, #tpu.memory_space<vmem>>, vector<32x32xf32>
    %c0_2 = arith.constant 0 : index
    %c0_3 = arith.constant 0 : index
    %c0_4 = arith.constant 0 : index
    %c0_5 = arith.constant 0 : index
    %4 = vector.load %arg3[%c0_2, %c0_3, %c0_4, %c0_5] : memref<1x2x32x32xf32, #tpu.memory_space<vmem>>, vector<1x2x32x32xf32>
    %5 = vector.shape_cast %4 : vector<1x2x32x32xf32> to vector<2x32x32xf32>
    %cst = arith.constant dense<0.000000e+00> : vector<32x32xf32>
    %6 = vector.multi_reduction <add>, %5, %cst [0] : vector<2x32x32xf32> to vector<32x32xf32>
    %7 = arith.addf %3, %6 : vector<32x32xf32>
    %c0_6 = arith.constant 0 : index
    %c0_7 = arith.constant 0 : index
    %8 = vector.load %arg8[%c0_6, %c0_7] : memref<32x32xf32, #tpu.memory_space<vmem>>, vector<32x32xf32>
    tpu.vector_store %arg8[%c0_6, %c0_7], %7 {strides = array<i32>} : memref<32x32xf32, #tpu.memory_space<vmem>>, vector<32x32xf32>,
    %c1_i32 = arith.constant 1 : i32
    %9 = arith.cmpi eq, %arg2, %c1_i32 : i32
    %10 = arith.extui %9 : i1 to i32
    %c0_i32_8 = arith.constant 0 : i32
    %11 = arith.cmpi ne, %10, %c0_i32_8 : i32
    scf.if %11 {
      %c0_9 = arith.constant 0 : index
      %c0_10 = arith.constant 0 : index
      %12 = vector.load %arg8[%c0_9, %c0_10] : memref<32x32xf32, #tpu.memory_space<vmem>>, vector<32x32xf32>
      %cst_11 = arith.constant 2.500000e-01 : f32
      %13 = vector.broadcast %cst_11 : f32 to vector<32x32xf32>
      %14 = arith.mulf %12, %13 : vector<32x32xf32>
      %c0_12 = arith.constant 0 : index
      %c0_13 = arith.constant 0 : index
      %15 = vector.load %arg4[%c0_12, %c0_13] : memref<32x32xf32, #tpu.memory_space<vmem>>, vector<32x32xf32>
      %16 = arith.addf %14, %15 : vector<32x32xf32>
      %cst_14 = arith.constant dense<0.000000e+00> : vector<32xf32>
      %17 = vector.multi_reduction <add>, %16, %cst_14 [1] : vector<32x32xf32> to vector<32xf32>
      %18 = vector.shape_cast %17 : vector<32xf32> to vector<32x1xf32>
      %cst_15 = arith.constant 3.200000e+01 : f32
      %19 = vector.broadcast %cst_15 : f32 to vector<32x1xf32>
      %20 = arith.divf %18, %19 : vector<32x1xf32>
      %21 = vector.broadcast %20 : vector<32x1xf32> to vector<32x32xf32>
      %22 = arith.subf %16, %21 : vector<32x32xf32>
      %23 = arith.mulf %22, %22 : vector<32x32xf32>
      %cst_16 = arith.constant dense<0.000000e+00> : vector<32xf32>
      %24 = vector.multi_reduction <add>, %23, %cst_16 [1] : vector<32x32xf32> to vector<32xf32>
      %25 = vector.shape_cast %24 : vector<32xf32> to vector<32x1xf32>
      %cst_17 = arith.constant 3.200000e+01 : f32
      %26 = vector.broadcast %cst_17 : f32 to vector<32x1xf32>
      %27 = arith.divf %25, %26 : vector<32x1xf32>
      %cst_18 = arith.constant 9.99999996E-13 : f32
      %28 = vector.broadcast %cst_18 : f32 to vector<32x1xf32>
      %29 = arith.addf %27, %28 : vector<32x1xf32>
      %30 = math.rsqrt %29 : vector<32x1xf32>
      %31 = vector.broadcast %30 : vector<32x1xf32> to vector<32x32xf32>
      %32 = arith.mulf %22, %31 : vector<32x32xf32>
      %c0_19 = arith.constant 0 : index
      %c0_20 = arith.constant 0 : index
      %33 = vector.load %arg5[%c0_19, %c0_20] : memref<1x32xf32, #tpu.memory_space<vmem>>, vector<1x32xf32>
      %34 = vector.broadcast %33 : vector<1x32xf32> to vector<32x32xf32>
      %35 = arith.mulf %32, %34 : vector<32x32xf32>
      %c0_21 = arith.constant 0 : index
      %c0_22 = arith.constant 0 : index
      %36 = vector.load %arg6[%c0_21, %c0_22] : memref<1x32xf32, #tpu.memory_space<vmem>>, vector<1x32xf32>
      %37 = vector.broadcast %36 : vector<1x32xf32> to vector<32x32xf32>
      %38 = arith.addf %35, %37 : vector<32x32xf32>
      %c0_23 = arith.constant 0 : index
      %c0_24 = arith.constant 0 : index
      %c0_25 = arith.constant 0 : index
      %39 = vector.load %arg7[%c0_23, %c0_24, %c0_25] : memref<1x32x32xf32, #tpu.memory_space<vmem>>, vector<1x32x32xf32>
      %40 = vector.shape_cast %39 : vector<1x32x32xf32> to vector<32x32xf32>
      %41 = vector.shape_cast %38 : vector<32x32xf32> to vector<1x32x32xf32>
      tpu.vector_store %arg7[%c0_23, %c0_24, %c0_25], %41 {strides = array<i32>} : memref<1x32x32xf32, #tpu.memory_space<vmem>>, vector<1x32x32xf32>,
    } else {
    }
    return
  }
  func.func @transform_0(%arg0: i32, %arg1: i32, %arg2: i32) -> (i32, i32, i32, i32) {
    %c0_i32 = arith.constant 0 : i32
    %c0_i32_0 = arith.constant 0 : i32
    return %arg1, %arg2, %arg0, %c0_i32 : i32, i32, i32, i32
  }
  func.func @transform_1(%arg0: i32, %arg1: i32, %arg2: i32) -> (i32, i32) {
    %c0_i32 = arith.constant 0 : i32
    %c0_i32_0 = arith.constant 0 : i32
    return %arg0, %c0_i32 : i32, i32
  }
  func.func @transform_2(%arg0: i32, %arg1: i32, %arg2: i32) -> (i32, i32) {
    %c0_i32 = arith.constant 0 : i32
    %c0_i32_0 = arith.constant 0 : i32
    %c0_i32_1 = arith.constant 0 : i32
    return %c0_i32, %c0_i32_0 : i32, i32
  }
  func.func @transform_3(%arg0: i32, %arg1: i32, %arg2: i32) -> (i32, i32) {
    %c0_i32 = arith.constant 0 : i32
    %c0_i32_0 = arith.constant 0 : i32
    %c0_i32_1 = arith.constant 0 : i32
    return %c0_i32, %c0_i32_0 : i32, i32
  }
  func.func @transform_4(%arg0: i32, %arg1: i32, %arg2: i32) -> (i32, i32, i32) {
    %c0_i32 = arith.constant 0 : i32
    %c0_i32_0 = arith.constant 0 : i32
    return %arg1, %arg0, %c0_i32 : i32, i32, i32
  }
}

</mosaic_0001>

<llo_original>
// kernel: tpu_custom_call.1
$region0: #{tpu_custom_call.1}
  #allocation0 [shape = 'u32[]', space=smem, size = 0x4, offset = 0x4, fixed_abs, tag = 'smem constant byte address 0x4 - core index']
  #allocation1 [shape = 'u32[144,128]{1,0:T(1,128)}', space=vmem, size = 0x12000, scoped, tag = 'internal scratch']
  #allocation2 [shape = 'f32[32,32]{1,0:T(8,128)}', space=vmem, size = 0x4000, scoped, tag = 'scratch operand']
  %s0 = inlined_call_operand.vmem [shape: f32[2,4,64,32], index: 0, kind: input, shape index: {}]
  %s1 = inlined_call_operand.vmem [shape: f32[64,32], index: 1, kind: input, shape index: {}]
  %s2 = inlined_call_operand.vmem [shape: f32[1,32], index: 2, kind: input, shape index: {}]
  %s3 = inlined_call_operand.vmem [shape: f32[1,32], index: 3, kind: input, shape index: {}]
  %s4 = inlined_call_operand.vmem [shape: f32[2,64,32], index: 4, kind: output, shape index: {}]
  %s5 = sld [smem:[#allocation0]]
  $region95: #{tpu_custom_call.1} parent=0
    _
  %s7 = ssub.s32 1, %s5
  %s8 = scalar_select 0, %s7, %s5
  $region1: #{tpu_custom_call.1} parent=0
    #allocation3 [shape = 'u8[65536]{0}', space=vmem, size = 0x10000, scoped, tag = 'input window, operand 0']
    loop: start=0, step=1, limit=10
    $region2: #{tpu_custom_call.1} parent=1 // loop_pre_header
      _
    $region3: #{tpu_custom_call.1} parent=1 // loop_header
      %s10 = sphi 0, %s14
      %p11 = scmp.ge.s32.totalorder %s10, 10
      %s17 = sphi 0, %s36
      %s18 = sphi 0, %s32
      %s19 = sphi 0, %s28
      %s20 = sphi 0, %s17
      %s21 = sphi 0, %s18
      %s22 = sphi 0, %s19
      %s23 = sphi 0, %s20
      %s24 = sphi 0, %s21
      %s25 = sphi 0, %s22
      %s43 = sphi 0, %s45
      %s46 = sphi 0, %s43
      %s47 = sphi 0, %s46
      %s63 = sphi 0, %s47
      %s69 = sphi 0, %s71
      %s72 = sphi 0, %s69
      %s73 = sphi 0, %s72
      %s89 = sphi 0, %s73
      %s93 = sphi 0, %s93
      %s95 = sphi 0, %s93
      %s96 = sphi 0, %s95
      %s110 = sphi 0, %s96
      %s114 = sphi 0, %s114
      %s116 = sphi 0, %s114
      %s117 = sphi 0, %s116
      %s131 = sphi 0, %s117
      %s139 = sphi 0, %s141
      %s142 = sphi 0, %s139
      %s143 = sphi 0, %s142
      %s159 = sphi 0, %s143
    $region4: #{tpu_custom_call.1} parent=1 // loop_header_branch
      %13 = sbr.rel (%p11) target = $region8
    $region5: #{tpu_custom_call.1} parent=1 // loop_body
      %s15 = ssub.s32 %s10, 1
      %s16 = ssub.s32 %s10, 2
      %s26 = sadd.s32 1, %s19
      %p27 = scmp.ge.s32.totalorder %s26, 2
      %s28 = scalar_select %p27, 0, %s26
      %s29 = sadd.s32 1, %s18
      %s30 = scalar_select %p27, %s29, %s18
      %p31 = scmp.ge.s32.totalorder %s30, 2
      %s32 = scalar_select %p31, 0, %s30
      %s33 = sadd.s32 1, %s17
      %s34 = scalar_select %p31, %s33, %s17
      %p35 = scmp.ge.s32.totalorder %s34, 2
      %s36 = scalar_select %p35, 0, %s34
      %s37 = ssub.s32 %s18, %s32
      %s38 = ssub.s32 %s19, %s28
      %s39 = sor.u32 %s37, %s38
      %s40 = ssub.s32 %s17, %s36
      %s41 = sor.u32 %s39, %s40
      %p42 = scmp.eq.s32.totalorder %s41, 0
      %s44 = sadd.s32 %s43, 1
      %s45 = scalar_select %p42, %s43, %s44
      %p48 = pneg %p42
      %p49 = scmp.eq.s32.totalorder %s10, 7
      %p50 = por %p48, %p49
      %p51 = scmp.ne.s32.totalorder %s43, %s46
      %p52 = scmp.eq.s32.totalorder %s10, 0
      %p53 = por %p51, %p52
      %p54 = scmp.ne.s32.totalorder %s43, %s46
      %p55 = scmp.eq.s32.totalorder %s15, 7
      %p56 = por %p54, %p55
      %p57 = scmp.ne.s32.totalorder %s46, %s47
      %p58 = scmp.eq.s32.totalorder %s15, 0
      %p59 = por %p57, %p58
      %p60 = scmp.ne.s32.totalorder %s46, %s47
      %p61 = scmp.eq.s32.totalorder %s16, 7
      %p62 = por %p60, %p61
      %p64 = scmp.ne.s32.totalorder %s47, %s63
      %p65 = scmp.eq.s32.totalorder %s16, 0
      %p66 = por %p64, %p65
      %s67 = ssub.s32 %s17, %s36
      %p68 = scmp.eq.s32.totalorder %s67, 0
      %s70 = sadd.s32 %s69, 1
      %s71 = scalar_select %p68, %s69, %s70
      %p74 = pneg %p68
      %p75 = scmp.eq.s32.totalorder %s10, 7
      %p76 = por %p74, %p75
      %p77 = scmp.ne.s32.totalorder %s69, %s72
      %p78 = scmp.eq.s32.totalorder %s10, 0
      %p79 = por %p77, %p78
      %p80 = scmp.ne.s32.totalorder %s69, %s72
      %p81 = scmp.eq.s32.totalorder %s15, 7
      %p82 = por %p80, %p81
      %p83 = scmp.ne.s32.totalorder %s72, %s73
      %p84 = scmp.eq.s32.totalorder %s15, 0
      %p85 = por %p83, %p84
      %p86 = scmp.ne.s32.totalorder %s72, %s73
      %p87 = scmp.eq.s32.totalorder %s16, 7
      %p88 = por %p86, %p87
      %p90 = scmp.ne.s32.totalorder %s73, %s89
      %p91 = scmp.eq.s32.totalorder %s16, 0
      %p92 = por %p90, %p91
      %s94 = sadd.s32 %s93, 1
      %p97 = scmp.eq.s32.totalorder %s10, 7
      %p98 = scmp.ne.s32.totalorder %s93, %s95
      %p99 = scmp.eq.s32.totalorder %s10, 0
      %p100 = por %p98, %p99
      %p101 = scmp.ne.s32.totalorder %s93, %s95
      %p102 = scmp.eq.s32.totalorder %s15, 7
      %p103 = por %p101, %p102
      %p104 = scmp.ne.s32.totalorder %s95, %s96
      %p105 = scmp.eq.s32.totalorder %s15, 0
      %p106 = por %p104, %p105
      %p107 = scmp.ne.s32.totalorder %s95, %s96
      %p108 = scmp.eq.s32.totalorder %s16, 7
      %p109 = por %p107, %p108
      %p111 = scmp.ne.s32.totalorder %s96, %s110
      %p112 = scmp.eq.s32.totalorder %s16, 0
      %p113 = por %p111, %p112
      %s115 = sadd.s32 %s114, 1
      %p118 = scmp.eq.s32.totalorder %s10, 7
      %p119 = scmp.ne.s32.totalorder %s114, %s116
      %p120 = scmp.eq.s32.totalorder %s10, 0
      %p121 = por %p119, %p120
      %p122 = scmp.ne.s32.totalorder %s114, %s116
      %p123 = scmp.eq.s32.totalorder %s15, 7
      %p124 = por %p122, %p123
      %p125 = scmp.ne.s32.totalorder %s116, %s117
      %p126 = scmp.eq.s32.totalorder %s15, 0
      %p127 = por %p125, %p126
      %p128 = scmp.ne.s32.totalorder %s116, %s117
      %p129 = scmp.eq.s32.totalorder %s16, 7
      %p130 = por %p128, %p129
      %p132 = scmp.ne.s32.totalorder %s117, %s131
      %p133 = scmp.eq.s32.totalorder %s16, 0
      %p134 = por %p132, %p133
      %s135 = ssub.s32 %s18, %s32
      %s136 = ssub.s32 %s17, %s36
      %s137 = sor.u32 %s135, %s136
      %p138 = scmp.eq.s32.totalorder %s137, 0
      %s140 = sadd.s32 %s139, 1
      %s141 = scalar_select %p138, %s139, %s140
      %p144 = pneg %p138
      %p145 = scmp.eq.s32.totalorder %s10, 7
      %p146 = por %p144, %p145
      %p147 = scmp.ne.s32.totalorder %s139, %s142
      %p148 = scmp.eq.s32.totalorder %s10, 0
      %p149 = por %p147, %p148
      %p150 = scmp.ne.s32.totalorder %s139, %s142
      %p151 = scmp.eq.s32.totalorder %s15, 7
      %p152 = por %p150, %p151
      %p153 = scmp.ne.s32.totalorder %s142, %s143
      %p154 = scmp.eq.s32.totalorder %s15, 0
      %p155 = por %p153, %p154
      %p156 = scmp.ne.s32.totalorder %s142, %s143
      %p157 = scmp.eq.s32.totalorder %s16, 7
      %p158 = por %p156, %p157
      %p160 = scmp.ne.s32.totalorder %s143, %s159
      %p161 = scmp.eq.s32.totalorder %s16, 0
      %p162 = por %p160, %p161
      %p163 = scmp.le.s32.totalorder 1, %s10
      %p164 = scmp.lt.s32.totalorder %s10, 9
      %p165 = pnand %p163, %p164
      %p166 = pneg %p165
      // Predicated region
      $region9: #{tpu_custom_call.1} parent=5 // pred_check
        _
      $region10: #{tpu_custom_call.1} parent=5 // pred_check_branch
        %168 = sbr.rel (%p165) target = $region12
      $region11: #{tpu_custom_call.1} parent=5 // pred_region
        %s169 = ssub.s32 %s10, 1
        // Predicated region
        $region13: #{tpu_custom_call.1} parent=11 // pred_check
          %p170 = pneg %p106
        $region14: #{tpu_custom_call.1} parent=11 // pred_check_branch
          %172 = sbr.rel (%p170) target = $region16
        $region15: #{tpu_custom_call.1} parent=11 // pred_region
          _
        $region16: #{tpu_custom_call.1} parent=11 // pred_fallthru
          _
        // Predicated region
        $region17: #{tpu_custom_call.1} parent=11 // pred_check
          %p173 = pneg %p127
        $region18: #{tpu_custom_call.1} parent=11 // pred_check_branch
          %175 = sbr.rel (%p173) target = $region20
        $region19: #{tpu_custom_call.1} parent=11 // pred_region
          _
        $region20: #{tpu_custom_call.1} parent=11 // pred_fallthru
          _
      $region12: #{tpu_custom_call.1} parent=5 // pred_fallthru
        _
      %p176 = scmp.lt.s32.totalorder %s10, 8
      // Predicated region
      $region21: #{tpu_custom_call.1} parent=5 // pred_check
        %p177 = pneg %p176
      $region22: #{tpu_custom_call.1} parent=5 // pred_check_branch
        %179 = sbr.rel (%p177) target = $region24
      $region23: #{tpu_custom_call.1} parent=5 // pred_region
        // Predicated region
        $region25: #{tpu_custom_call.1} parent=23 // pred_check
          %p180 = pneg %p53
        $region26: #{tpu_custom_call.1} parent=23 // pred_check_branch
          %182 = sbr.rel (%p180) target = $region28
        $region27: #{tpu_custom_call.1} parent=23 // pred_region
          %s183 = sand.u32 %s43, 1
          %s184 = sand.u32 %s43, 1
          %s185 = smul.addr %s184, 64
          %s186 = scalar_lea.vmem [#allocation3], %s185
          %s187 = smul.u32 2, %s19
          %s188 = smul.u32 4, %s17
          %s189 = smul.addr %s187, 8
          %s190 = sadd.s32 %s188, %s189
          %s191 = smul.addr %s18, 32
          %s192 = sadd.s32 %s190, %s191
          %s193 = smul.addr %s192, 8
          %s194 = scalar_lea.vmem %s0, %s193
          // Predicated region
          $region29: #{tpu_custom_call.1} parent=27 // pred_check
            _
          $region30: #{tpu_custom_call.1} parent=27 // pred_check_branch
            %196 = sbr.rel (0) target = $region32
          $region31: #{tpu_custom_call.1} parent=27 // pred_region
            // Predicated region
            $region33: #{tpu_custom_call.1} parent=31 // pred_check
              _
            $region34: #{tpu_custom_call.1} parent=31 // pred_check_branch
              %198 = sbr.rel (0) target = $region36
            $region35: #{tpu_custom_call.1} parent=31 // pred_region
              // Predicated region
              $region48: #{tpu_custom_call.1} parent=35 // pred_check
                _
              $region49: #{tpu_custom_call.1} parent=35 // pred_check_branch
                %228 = sbr.rel (0) target = $region51
              $region50: #{tpu_custom_call.1} parent=35 // pred_region
                loop: start=0, step=1, limit=1
                $region52: #{tpu_custom_call.1} parent=50 // loop_pre_header
                  _
                $region53: #{tpu_custom_call.1} parent=50 // loop_header
                  %s230 = sphi 0, %s234
                  %p231 = scmp.ge.s32.totalorder %s230, 1
                  %s235 = sphi %s194, %s194
                  %s236 = sphi %s186, %s186
                $region54: #{tpu_custom_call.1} parent=50 // loop_header_branch
                  %233 = sbr.rel (%p231) target = $region58
                $region55: #{tpu_custom_call.1} parent=50 // loop_body
                  %v237 = vld [vmem:[%s235] sm:$0xff]
                  %238 = vst [vmem:[%s236] sm:$0xff] %v237
                  %v239 = vld [vmem:[%s235 + $0x8] sm:$0xff]
                  %240 = vst [vmem:[%s236 + $0x8] sm:$0xff] %v239
                  %v241 = vld [vmem:[%s235 + $0x10] sm:$0xff]
                  %242 = vst [vmem:[%s236 + $0x10] sm:$0xff] %v241
                  %v243 = vld [vmem:[%s235 + $0x18] sm:$0xff]
                  %244 = vst [vmem:[%s236 + $0x18] sm:$0xff] %v243
                  %v245 = vld [vmem:[%s235 + $0x40] sm:$0xff]
                  %246 = vst [vmem:[%s236 + $0x20] sm:$0xff] %v245
                  %v247 = vld [vmem:[%s235 + $0x48] sm:$0xff]
                  %248 = vst [vmem:[%s236 + $0x28] sm:$0xff] %v247
                  %v249 = vld [vmem:[%s235 + $0x50] sm:$0xff]
                  %250 = vst [vmem:[%s236 + $0x30] sm:$0xff] %v249
                  %v251 = vld [vmem:[%s235 + $0x58] sm:$0xff]
                  %252 = vst [vmem:[%s236 + $0x38] sm:$0xff] %v251
                $region56: #{tpu_custom_call.1} parent=50 // loop_footer
                  %s234 = sadd.s32 1, %s230
                $region57: #{tpu_custom_call.1} parent=50 // loop_footer_branch
                  %229 = sbr.rel target = $region53
                $region58: #{tpu_custom_call.1} parent=50 // loop_exit
                  _
              $region51: #{tpu_custom_call.1} parent=35 // pred_fallthru
                _
              // Predicated region
              $region59: #{tpu_custom_call.1} parent=35 // pred_check
                _
              $region60: #{tpu_custom_call.1} parent=35 // pred_check_branch
                %254 = sbr.rel target = $region62
              $region61: #{tpu_custom_call.1} parent=35 // pred_region
                _
              $region62: #{tpu_custom_call.1} parent=35 // pred_fallthru
                _
            $region36: #{tpu_custom_call.1} parent=31 // pred_fallthru
              _
            // Predicated region
            $region37: #{tpu_custom_call.1} parent=31 // pred_check
              _
            $region38: #{tpu_custom_call.1} parent=31 // pred_check_branch
              %200 = sbr.rel target = $region40
            $region39: #{tpu_custom_call.1} parent=31 // pred_region
              %s202 = ssub.s32 256, 1
              loop: start=0, step=1, limit=1
              $region41: #{tpu_custom_call.1} parent=39 // loop_pre_header
                _
              $region42: #{tpu_custom_call.1} parent=39 // loop_header
                %s204 = sphi 0, %s208
                %p205 = scmp.ge.s32.totalorder %s204, 1
                %s209 = sphi %s194, %s194
                %s210 = sphi %s186, %s186
              $region43: #{tpu_custom_call.1} parent=39 // loop_header_branch
                %207 = sbr.rel (%p205) target = $region47
              $region44: #{tpu_custom_call.1} parent=39 // loop_body
                %v211 = vld [vmem:[%s209] sm:%s202]
                %212 = vst [vmem:[%s210] sm:%s202] %v211
                %v213 = vld [vmem:[%s209 + $0x8] sm:%s202]
                %214 = vst [vmem:[%s210 + $0x8] sm:%s202] %v213
                %v215 = vld [vmem:[%s209 + $0x10] sm:%s202]
                %216 = vst [vmem:[%s210 + $0x10] sm:%s202] %v215
                %v217 = vld [vmem:[%s209 + $0x18] sm:%s202]
                %218 = vst [vmem:[%s210 + $0x18] sm:%s202] %v217
                %v219 = vld [vmem:[%s209 + $0x40] sm:%s202]
                %220 = vst [vmem:[%s210 + $0x20] sm:%s202] %v219
                %v221 = vld [vmem:[%s209 + $0x48] sm:%s202]
                %222 = vst [vmem:[%s210 + $0x28] sm:%s202] %v221
                %v223 = vld [vmem:[%s209 + $0x50] sm:%s202]
                %224 = vst [vmem:[%s210 + $0x30] sm:%s202] %v223
                %v225 = vld [vmem:[%s209 + $0x58] sm:%s202]
                %226 = vst [vmem:[%s210 + $0x38] sm:%s202] %v225
              $region45: #{tpu_custom_call.1} parent=39 // loop_footer
                %s208 = sadd.s32 1, %s204
              $region46: #{tpu_custom_call.1} parent=39 // loop_footer_branch
                %203 = sbr.rel target = $region42
              $region47: #{tpu_custom_call.1} parent=39 // loop_exit
                _
            $region40: #{tpu_custom_call.1} parent=31 // pred_fallthru
              _
          $region32: #{tpu_custom_call.1} parent=27 // pred_fallthru
            _
          %255 = vnop
        $region28: #{tpu_custom_call.1} parent=23 // pred_fallthru
          _
        // Predicated region
        $region63: #{tpu_custom_call.1} parent=23 // pred_check
          %p256 = pneg %p79
        $region64: #{tpu_custom_call.1} parent=23 // pred_check_branch
          %258 = sbr.rel (%p256) target = $region66
        $region65: #{tpu_custom_call.1} parent=23 // pred_region
          %s259 = smul.u32 4, %s17
          %p260 = scmp.lt.s32.totalorder %s259, 7
          %s261 = scalar_select %p260, %s259, 7
          %s262 = smul.addr %s261, 8
          %s263 = scalar_lea.vmem %s1, %s262
          %s264 = smul.u32 4, %s17
        $region66: #{tpu_custom_call.1} parent=23 // pred_fallthru
          _
      $region24: #{tpu_custom_call.1} parent=5 // pred_fallthru
        _
      %p265 = scmp.le.s32.totalorder 1, %s10
      %p266 = scmp.lt.s32.totalorder %s10, 9
      %p267 = pnand %p265, %p266
      %p268 = pneg %p267
      // Predicated region
      $region67: #{tpu_custom_call.1} parent=5 // pred_check
        _
      $region68: #{tpu_custom_call.1} parent=5 // pred_check_branch
        %270 = sbr.rel (%p267) target = $region70
      $region69: #{tpu_custom_call.1} parent=5 // pred_region
        %s271 = ssub.s32 %s10, 1
        %s272 = sand.u32 %s46, 1
        %s273 = sand.u32 %s46, 1
        %s274 = smul.addr %s273, 64
        %s275 = scalar_lea.vmem [#allocation3], %s274
        // Predicated region
        $region71: #{tpu_custom_call.1} parent=69 // pred_check
          %p276 = pneg %p59
        $region72: #{tpu_custom_call.1} parent=69 // pred_check_branch
          %278 = sbr.rel (%p276) target = $region74
        $region73: #{tpu_custom_call.1} parent=69 // pred_region
          _
        $region74: #{tpu_custom_call.1} parent=69 // pred_fallthru
          _
        %s279 = sand.u32 %s46, 1
        %s280 = sand.u32 %s46, 1
        %s281 = smul.addr %s280, 64
        %s282 = scalar_lea.vmem [#allocation3], %s281
        %p283 = pneg %p59
        %p284 = pneg %p56
        %s285 = smul.u32 4, %s20
        %p286 = scmp.lt.s32.totalorder %s285, 7
        %s287 = scalar_select %p286, %s285, 7
        %s288 = smul.addr %s287, 8
        %s289 = scalar_lea.vmem %s1, %s288
        %p290 = pneg %p85
        %p291 = pneg %p82
        %p292 = pneg %p106
        %p293 = pneg %p103
        %p294 = pneg %p127
        %p295 = pneg %p124
        %p296 = pneg %p155
        %p297 = pneg %p152
        %s298 = smul.u32 4, %s20
        %p299 = scmp.lt.s32.totalorder %s21, 1
        %s300 = scalar_select %p299, %s21, 1
        %p301 = scmp.lt.s32.totalorder %s298, 7
        %s302 = scalar_select %p301, %s298, 7
        %s303 = smul.addr %s300, 8
        %s304 = sadd.s32 %s302, %s303
        %s305 = smul.addr %s304, 8
        %s306 = scalar_lea.vmem %s4, %s305
        %s307 = smul.u32 2, %s22
        %s308 = smul.u32 4, %s20
        %s309 = smul.u32 4, %s20
        %p310 = scmp.lt.s32.totalorder %s309, 7
        %s311 = scalar_select %p310, %s309, 7
        %s312 = smul.addr %s311, 8
        %s313 = scalar_lea.vmem %s1, %s312
        %s314 = smul.u32 4, %s20
        %s315 = smul.u32 4, %s20
        %p316 = scmp.lt.s32.totalorder %s21, 1
        %s317 = scalar_select %p316, %s21, 1
        %p318 = scmp.lt.s32.totalorder %s315, 7
        %s319 = scalar_select %p318, %s315, 7
        %s320 = smul.addr %s317, 8
        %s321 = sadd.s32 %s319, %s320
        %s322 = smul.addr %s321, 8
        %s323 = scalar_lea.vmem %s4, %s322
        %s324 = smul.u32 4, %s20
        %p325 = scmp.eq.s32.totalorder %s22, 0
        // Predicated region
        $region75: #{tpu_custom_call.1} parent=69 // pred_check
          %p326 = pneg %p325
        $region76: #{tpu_custom_call.1} parent=69 // pred_check_branch
          %328 = sbr.rel (%p326) target = $region78
        $region77: #{tpu_custom_call.1} parent=69 // pred_region
          %vm329 = vcmask 261120
          %330 = vst.msk [vmem:[#allocation2] sm:$0xff] %vm329, 0.0
          %331 = vst.msk [vmem:[#allocation2 + $0x8] sm:$0xff] %vm329, 0.0
          %332 = vst.msk [vmem:[#allocation2 + $0x10] sm:$0xff] %vm329, 0.0
          %333 = vst.msk [vmem:[#allocation2 + $0x18] sm:$0xff] %vm329, 0.0
        $region78: #{tpu_custom_call.1} parent=69 // pred_fallthru
          _
        %v334 = vld [vmem:[#allocation2] sm:$0xff]
        %v335 = vld [vmem:[#allocation2 + $0x8] sm:$0xff]
        %v336 = vld [vmem:[#allocation2 + $0x10] sm:$0xff]
        %v337 = vld [vmem:[#allocation2 + $0x18] sm:$0xff]
        %v338 = vld [vmem:[%s275] sm:$0xff]
        %v339 = vld [vmem:[%s275 + $0x8] sm:$0xff]
        %v340 = vld [vmem:[%s275 + $0x10] sm:$0xff]
        %v341 = vld [vmem:[%s275 + $0x18] sm:$0xff]
        %v342 = vld [vmem:[%s275 + $0x20] sm:$0xff]
        %v343 = vld [vmem:[%s275 + $0x28] sm:$0xff]
        %v344 = vld [vmem:[%s275 + $0x30] sm:$0xff]
        %v345 = vld [vmem:[%s275 + $0x38] sm:$0xff]
        %vm346 = vcmask 261120
        %v347 = vsel %vm346, %v338, 0.0
        %v348 = vsel %vm346, %v342, 0.0
        %v349 = vadd.f32 %v347, %v348
        %v350 = vsel %vm346, %v339, 0.0
        %v351 = vsel %vm346, %v343, 0.0
        %v352 = vadd.f32 %v350, %v351
        %v353 = vsel %vm346, %v340, 0.0
        %v354 = vsel %vm346, %v344, 0.0
        %v355 = vadd.f32 %v353, %v354
        %v356 = vsel %vm346, %v341, 0.0
        %v357 = vsel %vm346, %v345, 0.0
        %v358 = vadd.f32 %v356, %v357
        %v359 = vadd.f32 %v334, %v349
        %v360 = vadd.f32 %v335, %v352
        %v361 = vadd.f32 %v336, %v355
        %v362 = vadd.f32 %v337, %v358
        %363 = vst.msk [vmem:[#allocation2] sm:$0xff] %vm346, %v359
        %364 = vst.msk [vmem:[#allocation2 + $0x8] sm:$0xff] %vm346, %v360
        %365 = vst.msk [vmem:[#allocation2 + $0x10] sm:$0xff] %vm346, %v361
        %366 = vst.msk [vmem:[#allocation2 + $0x18] sm:$0xff] %vm346, %v362
        %p367 = scmp.eq.s32.totalorder %s22, 1
        // Predicated region
        $region79: #{tpu_custom_call.1} parent=69 // pred_check
          %p368 = pneg %p367
        $region80: #{tpu_custom_call.1} parent=69 // pred_check_branch
          %370 = sbr.rel (%p368) target = $region82
        $region81: #{tpu_custom_call.1} parent=69 // pred_region
          %v371 = vld [vmem:[#allocation2] sm:$0xff]
          %v372 = vld [vmem:[#allocation2 + $0x8] sm:$0xff]
          %v373 = vld [vmem:[#allocation2 + $0x10] sm:$0xff]
          %v374 = vld [vmem:[#allocation2 + $0x18] sm:$0xff]
          %v375 = vmul.f32 %v371, 0.25
          %v376 = vmul.f32 %v372, 0.25
          %v377 = vmul.f32 %v373, 0.25
          %v378 = vmul.f32 %v374, 0.25
          %v379 = vld [vmem:[%s313] sm:$0xff]
          %v380 = vld [vmem:[%s313 + $0x8] sm:$0xff]
          %v381 = vld [vmem:[%s313 + $0x10] sm:$0xff]
          %v382 = vld [vmem:[%s313 + $0x18] sm:$0xff]
          %v383 = vadd.f32 %v375, %v379
          %v384 = vadd.f32 %v376, %v380
          %v385 = vadd.f32 %v377, %v381
          %v386 = vadd.f32 %v378, %v382
          %v387 = vsel %vm346, %v383, 0.0
          %388 = vadd.xlane.f32.xlu0 %v387
          %v389 = vpop.xlane.xlu0 %388
          %v390 = vsel %vm346, %v384, 0.0
          %391 = vadd.xlane.f32.xlu0 %v390
          %v392 = vpop.xlane.xlu0 %391
          %v393 = vsel %vm346, %v385, 0.0
          %394 = vadd.xlane.f32.xlu0 %v393
          %v395 = vpop.xlane.xlu0 %394
          %v396 = vsel %vm346, %v386, 0.0
          %397 = vadd.xlane.f32.xlu0 %v396
          %v398 = vpop.xlane.xlu0 %397
          %v399 = vrcp.pop 32.0
          %v400 = vmul.f32 %v389, %v399
          %v401 = vmul.f32 %v392, %v399
          %v402 = vmul.f32 %v395, %v399
          %v403 = vmul.f32 %v398, %v399
          %v404 = vsub.f32 %v383, %v400
          %v405 = vsub.f32 %v384, %v401
          %v406 = vsub.f32 %v385, %v402
          %v407 = vsub.f32 %v386, %v403
          %v408 = vmul.f32 %v404, %v404
          %v409 = vmul.f32 %v405, %v405
          %v410 = vmul.f32 %v406, %v406
          %v411 = vmul.f32 %v407, %v407
          %v412 = vsel %vm346, %v408, 0.0
          %413 = vadd.xlane.f32.xlu0 %v412
          %v414 = vpop.xlane.xlu0 %413
          %v415 = vsel %vm346, %v409, 0.0
          %416 = vadd.xlane.f32.xlu0 %v415
          %v417 = vpop.xlane.xlu0 %416
          %v418 = vsel %vm346, %v410, 0.0
          %419 = vadd.xlane.f32.xlu0 %v418
          %v420 = vpop.xlane.xlu0 %419
          %v421 = vsel %vm346, %v411, 0.0
          %422 = vadd.xlane.f32.xlu0 %v421
          %v423 = vpop.xlane.xlu0 %422
          %v424 = vmul.f32 %v414, %v399
          %v425 = vmul.f32 %v417, %v399
          %v426 = vmul.f32 %v420, %v399
          %v427 = vmul.f32 %v423, %v399
          %v428 = vadd.f32 %v424, 1e-12
          %v429 = vadd.f32 %v425, 1e-12
          %v430 = vadd.f32 %v426, 1e-12
          %v431 = vadd.f32 %v427, 1e-12
          %v432 = vrsqrt.pop %v428
          %v433 = vrsqrt.pop %v429
          %v434 = vrsqrt.pop %v430
          %v435 = vrsqrt.pop %v431
          %v436 = vmul.f32 %v404, %v432
          %v437 = vmul.f32 %v405, %v433
          %v438 = vmul.f32 %v406, %v434
          %v439 = vmul.f32 %v407, %v435
          %v440 = vld [vmem:[%s2] sm:$0x1]
          %v442 = vlaneseq
          %v443 = vshrl.u32 %v442, 7
          %v444 = vsub.s32 0, %v443
          %v445 = vrot.slane %v440, %v444
          %v447 = vmul.f32 %v436, %v445
          %v448 = vmul.f32 %v437, %v445
          %v449 = vmul.f32 %v438, %v445
          %v450 = vmul.f32 %v439, %v445
          %v451 = vld [vmem:[%s3] sm:$0x1]
          %v453 = vlaneseq
          %v454 = vshrl.u32 %v453, 7
          %v455 = vsub.s32 0, %v454
          %v456 = vrot.slane %v451, %v455
          %v458 = vadd.f32 %v447, %v456
          %v459 = vadd.f32 %v448, %v456
          %v460 = vadd.f32 %v449, %v456
          %v461 = vadd.f32 %v450, %v456
          %462 = vst.msk [vmem:[%s323] sm:$0xff] %vm346, %v458
          %463 = vst.msk [vmem:[%s323 + $0x8] sm:$0xff] %vm346, %v459
          %464 = vst.msk [vmem:[%s323 + $0x10] sm:$0xff] %vm346, %v460
          %465 = vst.msk [vmem:[%s323 + $0x18] sm:$0xff] %vm346, %v461
        $region82: #{tpu_custom_call.1} parent=69 // pred_fallthru
          _
        %s466 = smul.u32 4, %s20
        %p467 = scmp.lt.s32.totalorder %s21, 1
        %s468 = scalar_select %p467, %s21, 1
        %p469 = scmp.lt.s32.totalorder %s466, 7
        %s470 = scalar_select %p469, %s466, 7
        %s471 = smul.addr %s468, 8
        %s472 = sadd.s32 %s470, %s471
        %s473 = smul.addr %s472, 8
        %s474 = scalar_lea.vmem %s4, %s473
        // Predicated region
        $region83: #{tpu_custom_call.1} parent=69 // pred_check
          %p475 = pneg %p152
        $region84: #{tpu_custom_call.1} parent=69 // pred_check_branch
          %477 = sbr.rel (%p475) target = $region86
        $region85: #{tpu_custom_call.1} parent=69 // pred_region
          %s478 = smul.u32 4, %s20
        $region86: #{tpu_custom_call.1} parent=69 // pred_fallthru
          _
      $region70: #{tpu_custom_call.1} parent=5 // pred_fallthru
        _
      %p479 = scmp.le.s32.totalorder 2, %s10
      // Predicated region
      $region87: #{tpu_custom_call.1} parent=5 // pred_check
        %p480 = pneg %p479
      $region88: #{tpu_custom_call.1} parent=5 // pred_check_branch
        %482 = sbr.rel (%p480) target = $region90
      $region89: #{tpu_custom_call.1} parent=5 // pred_region
        %s483 = ssub.s32 %s10, 2
        // Predicated region
        $region91: #{tpu_custom_call.1} parent=89 // pred_check
          %p484 = pneg %p158
        $region92: #{tpu_custom_call.1} parent=89 // pred_check_branch
          %486 = sbr.rel (%p484) target = $region94
        $region93: #{tpu_custom_call.1} parent=89 // pred_region
          %s487 = smul.u32 4, %s23
          %p488 = scmp.lt.s32.totalorder %s24, 1
          %s489 = scalar_select %p488, %s24, 1
          %p490 = scmp.lt.s32.totalorder %s487, 7
          %s491 = scalar_select %p490, %s487, 7
          %s492 = smul.addr %s489, 8
          %s493 = sadd.s32 %s491, %s492
          %s494 = smul.addr %s493, 8
          %s495 = scalar_lea.vmem %s4, %s494
        $region94: #{tpu_custom_call.1} parent=89 // pred_fallthru
          _
      $region90: #{tpu_custom_call.1} parent=5 // pred_fallthru
        _
    $region6: #{tpu_custom_call.1} parent=1 // loop_footer
      %s14 = sadd.s32 1, %s10
    $region7: #{tpu_custom_call.1} parent=1 // loop_footer_branch
      %9 = sbr.rel target = $region3
    $region8: #{tpu_custom_call.1} parent=1 // loop_exit
      _

</llo_original>
